<compile_context>
chip_gen: v7x
topology: tpu7x:2x2x1
jax: 0.10.0
libtpu: 0.0.40
codegen_flags: <defaults>
</compile_context>

<pallas_src>
import functools
import itertools

import jax
import jax.numpy as jnp
from jax.experimental import pallas as pl
from jax.experimental.pallas import tpu as pltpu


def _bp_loss_kernel(x_ref, out_ref, *, num_parts, hidden_dim, margin, pd_eps,
                    total_batch, num_pairs, parts_on_lanes):
    # x_ref  : (tb, P*H) tile (main path) or (P, tb, H) tile (fallback path).
    # out_ref: (8, 128) per-split partial-sum block, resident across the
    #          batch-reduction ("arbitrary") grid axis.
    bi = pl.program_id(1)

    @pl.when(bi == 0)
    def _():
        out_ref[...] = jnp.zeros_like(out_ref)

    H = hidden_dim
    if parts_on_lanes:
        # Static lane slices: zero-cost views, widened to f32 once per part.
        xs = [x_ref[:, i * H:(i + 1) * H].astype(jnp.float32)
              for i in range(num_parts)]
    else:
        # Fallback layout: leading-axis part slabs.
        xs = [x_ref[i].astype(jnp.float32) for i in range(num_parts)]

    pairs = list(itertools.combinations(range(num_parts), 2))
    # Fold PairwiseDistance's elementwise eps into the second operand once per
    # part:  xi - xj + eps == xi - (xj - eps).
    ys = {j: xs[j] - pd_eps for j in sorted({j for _, j in pairs})}

    # Per-pair squared L2 along the lane (hidden) axis; keep only the small
    # (tb, 1) columns (no num_pairs*tb*H concatenation).
    sq_cols = [jnp.sum((xs[i] - ys[j]) * (xs[i] - ys[j]), axis=-1, keepdims=True)
               for (i, j) in pairs]
    sq = jnp.concatenate(sq_cols, axis=-1)                  # (tb, num_pairs), lane-dense
    dist = jnp.sqrt(sq) * (1.0 / float(H))
    delta = jnp.maximum(margin - dist, 0.0)                 # clamp(min=0)

    # Running sum of delta^2, broadcast over the resident (8, 128) block
    # (every element carries the same partial sum; the wrapper reads [0, 0]).
    out_ref[...] += jnp.sum(delta * delta)

    @pl.when(bi == pl.num_programs(1) - 1)
    def _():
        # partial = sum_{pairs,batch-slice} delta^2 * 0.5 / (b * num_pairs)
        out_ref[...] = out_ref[...] * (0.5 / (total_batch * num_pairs))


def _pick_batch_tile(b, per_row_bytes, budget_bytes):
    """Largest batch tile whose double-buffered input block plus in-kernel f32
    intermediates stay within the VMEM budget; tile is a multiple of 16 (bf16
    sublane packing, also covers f32's 8) unless it is the full batch."""
    cap = max(8, budget_bytes // max(int(per_row_bytes), 1))
    if b <= cap:
        return b
    for tb in range(min(cap, b), 0, -1):
        if b % tb == 0 and tb % 16 == 0:
            return tb
    for tb in range(min(cap, b), 0, -1):
        if b % tb == 0 and tb % 8 == 0:
            return tb
    # TODO(synk): huge odd batch sizes with no 8-aligned divisor fall back to a
    # single block (correct, but ignores the budget).
    return b


def bp_loss(x, margin=1.0):
    """x: (b, num_parts, h, w) array (any float dtype). Returns scalar f32 loss."""
    b, num_parts, h, w = x.shape
    H = h * w
    pairs = list(itertools.combinations(range(num_parts), 2))
    num_pairs = len(pairs)

    parts_on_lanes = (H % 128 == 0)
    if parts_on_lanes:
        xr = x.reshape(b, num_parts * H)            # free reshape, no extra HBM pass
    else:
        # Fallback: parts on the leading axis (one extra HBM transpose pass).
        xr = jnp.transpose(x.reshape(b, num_parts, H), (1, 0, 2))   # (P, b, H)

    # Per-batch-row VMEM bytes: double-buffered input block + widened f32 parts
    # + eps-shifted parts + per-pair diff/square temporaries (slack).
    itemsize = xr.dtype.itemsize
    per_row_bytes = (2 * num_parts * H * itemsize
                     + (2 * num_parts + 4) * H * 4)
    budget_bytes = 36 * 1024 * 1024                 # leaves headroom under v7x's 64 MiB
    tb = _pick_batch_tile(b, per_row_bytes, budget_bytes)

    n_tiles = b // tb
    # 2-way batch split so v7x's two TensorCores both run; no-op when there is
    # a single batch tile, harmless serial loop on single-core v5e/v6e.
    num_splits = 2 if (n_tiles >= 2 and n_tiles % 2 == 0) else 1
    steps = n_tiles // num_splits

    if parts_on_lanes:
        in_spec = pl.BlockSpec((tb, num_parts * H),
                               lambda c, bi: (c * steps + bi, 0))
    else:
        in_spec = pl.BlockSpec((num_parts, tb, H),
                               lambda c, bi: (0, c * steps + bi, 0))

    out_spec = pl.BlockSpec((8, 128), lambda c, bi: (c, 0))

    kernel = functools.partial(
        _bp_loss_kernel,
        num_parts=num_parts,
        hidden_dim=H,
        margin=float(margin),
        pd_eps=1e-6,
        total_batch=b,
        num_pairs=num_pairs,
        parts_on_lanes=parts_on_lanes,
    )

    out = pl.pallas_call(
        kernel,
        out_shape=jax.ShapeDtypeStruct((num_splits * 8, 128), jnp.float32),
        grid_spec=pltpu.PrefetchScalarGridSpec(
            num_scalar_prefetch=0,
            grid=(num_splits, steps),
            in_specs=[in_spec],
            out_specs=out_spec,
        ),
        compiler_params=pltpu.CompilerParams(
            dimension_semantics=("parallel", "arbitrary"),
            vmem_limit_bytes=48 * 1024 * 1024,
        ),
    )(xr)

    partials = out.reshape(num_splits, 8, 128)[:, 0, 0]
    return jnp.sum(partials)


def bp_loss_ref(x, margin=1.0):
    """Pure-JAX reference mirroring the PyTorch forward."""
    b, num_parts, h, w = x.shape
    hidden_dim = h * w
    xr = x.reshape(b, num_parts, hidden_dim).astype(jnp.float32)
    pairs = list(itertools.combinations(range(num_parts), 2))
    loss = 0.0
    for (i, j) in pairs:
        diff = xr[:, i, :] - xr[:, j, :] + 1e-6
        dist = jnp.sqrt(jnp.sum(diff * diff, axis=-1, keepdims=True)) / hidden_dim
        delta = jnp.maximum(margin - dist, 0.0)
        loss = loss + 0.5 * jnp.mean(delta ** 2)
    return loss / len(pairs)


if __name__ == "__main__":
    key = jax.random.PRNGKey(0)
    # Shapes consistent with the module: batch=2, num_parts=4, h=w=16.
    x = jax.random.uniform(key, (2, 4, 16, 16), dtype=jnp.float32)

    out = jax.block_until_ready(bp_loss(x, margin=1.0))
    ref = jax.block_until_ready(bp_loss_ref(x, margin=1.0))

    assert jnp.allclose(out, ref, rtol=1e-5, atol=1e-6), (out, ref)
    print("KERNEL_OK")
</pallas_src>

<mosaic_0001>
module attributes {stable_mosaic.version = 11 : i64} {
  func.func @_bp_loss_kernel(%arg0: i32, %arg1: i32, %arg2: memref<2x1024xf32, #tpu.memory_space<vmem>>, %arg3: memref<8x128xf32, #tpu.memory_space<vmem>>) attributes {dimension_semantics = [#tpu.dimension_semantics<parallel>, #tpu.dimension_semantics<arbitrary>], iteration_bounds = array<i64: 1, 1>, scalar_prefetch = 0 : i64, scratch_operands = 0 : i64, tpu.core_type = #tpu.core_type<tc>, window_params = [{transform_indices = @transform_0, window_bounds = array<i64: 2, 1024>}, {transform_indices = @transform_1, window_bounds = array<i64: 8, 128>}]} {
    %c0_i32 = arith.constant 0 : i32
    %0 = arith.cmpi eq, %arg1, %c0_i32 : i32
    %1 = arith.extui %0 : i1 to i32
    %c0_i32_0 = arith.constant 0 : i32
    %2 = arith.cmpi ne, %1, %c0_i32_0 : i32
    scf.if %2 {
      %cst_23 = arith.constant 0.000000e+00 : f32
      %63 = vector.broadcast %cst_23 : f32 to vector<8x128xf32>
      %c0_24 = arith.constant 0 : index
      %c0_25 = arith.constant 0 : index
      %64 = vector.load %arg3[%c0_24, %c0_25] : memref<8x128xf32, #tpu.memory_space<vmem>>, vector<8x128xf32>
      tpu.vector_store %arg3[%c0_24, %c0_25], %63 {strides = array<i32>} : memref<8x128xf32, #tpu.memory_space<vmem>>, vector<8x128xf32>,
    } else {
    }
    %c0 = arith.constant 0 : index
    %c0_1 = arith.constant 0 : index
    %3 = vector.load %arg2[%c0, %c0_1] : memref<2x1024xf32, #tpu.memory_space<vmem>>, vector<2x256xf32>
    %c0_2 = arith.constant 0 : index
    %c256 = arith.constant 256 : index
    %4 = vector.load %arg2[%c0_2, %c256] : memref<2x1024xf32, #tpu.memory_space<vmem>>, vector<2x256xf32>
    %c0_3 = arith.constant 0 : index
    %c512 = arith.constant 512 : index
    %5 = vector.load %arg2[%c0_3, %c512] : memref<2x1024xf32, #tpu.memory_space<vmem>>, vector<2x256xf32>
    %c0_4 = arith.constant 0 : index
    %c768 = arith.constant 768 : index
    %6 = vector.load %arg2[%c0_4, %c768] : memref<2x1024xf32, #tpu.memory_space<vmem>>, vector<2x256xf32>
    %cst = arith.constant 9.99999997E-7 : f32
    %7 = vector.broadcast %cst : f32 to vector<2x256xf32>
    %8 = arith.subf %4, %7 : vector<2x256xf32>
    %cst_5 = arith.constant 9.99999997E-7 : f32
    %9 = vector.broadcast %cst_5 : f32 to vector<2x256xf32>
    %10 = arith.subf %5, %9 : vector<2x256xf32>
    %cst_6 = arith.constant 9.99999997E-7 : f32
    %11 = vector.broadcast %cst_6 : f32 to vector<2x256xf32>
    %12 = arith.subf %6, %11 : vector<2x256xf32>
    %13 = arith.subf %3, %8 : vector<2x256xf32>
    %14 = arith.subf %3, %8 : vector<2x256xf32>
    %15 = arith.mulf %13, %14 : vector<2x256xf32>
    %cst_7 = arith.constant dense<0.000000e+00> : vector<2xf32>
    %16 = vector.multi_reduction <add>, %15, %cst_7 [1] : vector<2x256xf32> to vector<2xf32>
    %17 = vector.shape_cast %16 : vector<2xf32> to vector<2x1xf32>
    %18 = arith.subf %3, %10 : vector<2x256xf32>
    %19 = arith.subf %3, %10 : vector<2x256xf32>
    %20 = arith.mulf %18, %19 : vector<2x256xf32>
    %cst_8 = arith.constant dense<0.000000e+00> : vector<2xf32>
    %21 = vector.multi_reduction <add>, %20, %cst_8 [1] : vector<2x256xf32> to vector<2xf32>
    %22 = vector.shape_cast %21 : vector<2xf32> to vector<2x1xf32>
    %23 = arith.subf %3, %12 : vector<2x256xf32>
    %24 = arith.subf %3, %12 : vector<2x256xf32>
    %25 = arith.mulf %23, %24 : vector<2x256xf32>
    %cst_9 = arith.constant dense<0.000000e+00> : vector<2xf32>
    %26 = vector.multi_reduction <add>, %25, %cst_9 [1] : vector<2x256xf32> to vector<2xf32>
    %27 = vector.shape_cast %26 : vector<2xf32> to vector<2x1xf32>
    %28 = arith.subf %4, %10 : vector<2x256xf32>
    %29 = arith.subf %4, %10 : vector<2x256xf32>
    %30 = arith.mulf %28, %29 : vector<2x256xf32>
    %cst_10 = arith.constant dense<0.000000e+00> : vector<2xf32>
    %31 = vector.multi_reduction <add>, %30, %cst_10 [1] : vector<2x256xf32> to vector<2xf32>
    %32 = vector.shape_cast %31 : vector<2xf32> to vector<2x1xf32>
    %33 = arith.subf %4, %12 : vector<2x256xf32>
    %34 = arith.subf %4, %12 : vector<2x256xf32>
    %35 = arith.mulf %33, %34 : vector<2x256xf32>
    %cst_11 = arith.constant dense<0.000000e+00> : vector<2xf32>
    %36 = vector.multi_reduction <add>, %35, %cst_11 [1] : vector<2x256xf32> to vector<2xf32>
    %37 = vector.shape_cast %36 : vector<2xf32> to vector<2x1xf32>
    %38 = arith.subf %5, %12 : vector<2x256xf32>
    %39 = arith.subf %5, %12 : vector<2x256xf32>
    %40 = arith.mulf %38, %39 : vector<2x256xf32>
    %cst_12 = arith.constant dense<0.000000e+00> : vector<2xf32>
    %41 = vector.multi_reduction <add>, %40, %cst_12 [1] : vector<2x256xf32> to vector<2xf32>
    %42 = vector.shape_cast %41 : vector<2xf32> to vector<2x1xf32>
    %43 = tpu.concatenate %17, %22, %27, %32, %37, %42 in 1 : vector<2x1xf32>, vector<2x1xf32>, vector<2x1xf32>, vector<2x1xf32>, vector<2x1xf32>, vector<2x1xf32> -> vector<2x6xf32>
    %44 = math.sqrt %43 : vector<2x6xf32>
    %cst_13 = arith.constant 3.906250e-03 : f32
    %45 = vector.broadcast %cst_13 : f32 to vector<2x6xf32>
    %46 = arith.mulf %44, %45 : vector<2x6xf32>
    %cst_14 = arith.constant 1.000000e+00 : f32
    %47 = vector.broadcast %cst_14 : f32 to vector<2x6xf32>
    %48 = arith.subf %47, %46 : vector<2x6xf32>
    %cst_15 = arith.constant 0.000000e+00 : f32
    %49 = vector.broadcast %cst_15 : f32 to vector<2x6xf32>
    %50 = arith.maximumf %48, %49 : vector<2x6xf32>
    %c0_16 = arith.constant 0 : index
    %c0_17 = arith.constant 0 : index
    %51 = vector.load %arg3[%c0_16, %c0_17] : memref<8x128xf32, #tpu.memory_space<vmem>>, vector<8x128xf32>
    %52 = arith.mulf %50, %50 : vector<2x6xf32>
    %53 = vector.shape_cast %52 : vector<2x6xf32> to vector<1x2x6xf32>
    %cst_18 = arith.constant dense<0.000000e+00> : vector<1xf32>
    %54 = vector.multi_reduction <add>, %53, %cst_18 [1, 2] : vector<1x2x6xf32> to vector<1xf32>
    %55 = vector.shape_cast %54 : vector<1xf32> to vector<1x1x1xf32>
    %56 = vector.extract %55[0, 0, 0] : f32 from vector<1x1x1xf32>
    %57 = vector.broadcast %56 : f32 to vector<8x128xf32>
    %58 = arith.addf %51, %57 : vector<8x128xf32>
    %c0_19 = arith.constant 0 : index
    %c0_20 = arith.constant 0 : index
    %59 = vector.load %arg3[%c0_19, %c0_20] : memref<8x128xf32, #tpu.memory_space<vmem>>, vector<8x128xf32>
    tpu.vector_store %arg3[%c0_19, %c0_20], %58 {strides = array<i32>} : memref<8x128xf32, #tpu.memory_space<vmem>>, vector<8x128xf32>,
    %c0_i32_21 = arith.constant 0 : i32
    %60 = arith.cmpi eq, %arg1, %c0_i32_21 : i32
    %61 = arith.extui %60 : i1 to i32
    %c0_i32_22 = arith.constant 0 : i32
    %62 = arith.cmpi ne, %61, %c0_i32_22 : i32
    scf.if %62 {
      %c0_23 = arith.constant 0 : index
      %c0_24 = arith.constant 0 : index
      %63 = vector.load %arg3[%c0_23, %c0_24] : memref<8x128xf32, #tpu.memory_space<vmem>>, vector<8x128xf32>
      %cst_25 = arith.constant 0.0416666679 : f32
      %64 = vector.broadcast %cst_25 : f32 to vector<8x128xf32>
      %65 = arith.mulf %63, %64 : vector<8x128xf32>
      %c0_26 = arith.constant 0 : index
      %c0_27 = arith.constant 0 : index
      %66 = vector.load %arg3[%c0_26, %c0_27] : memref<8x128xf32, #tpu.memory_space<vmem>>, vector<8x128xf32>
      tpu.vector_store %arg3[%c0_26, %c0_27], %65 {strides = array<i32>} : memref<8x128xf32, #tpu.memory_space<vmem>>, vector<8x128xf32>,
    } else {
    }
    return
  }
  func.func @transform_0(%arg0: i32, %arg1: i32) -> (i32, i32) {
    %c1_i32 = arith.constant 1 : i32
    %0 = arith.muli %arg0, %c1_i32 : i32
    %1 = arith.addi %0, %arg1 : i32
    %c0_i32 = arith.constant 0 : i32
    %c0_i32_0 = arith.constant 0 : i32
    return %1, %c0_i32 : i32, i32
  }
  func.func @transform_1(%arg0: i32, %arg1: i32) -> (i32, i32) {
    %c0_i32 = arith.constant 0 : i32
    %c0_i32_0 = arith.constant 0 : i32
    return %arg0, %c0_i32 : i32, i32
  }
}

</mosaic_0001>

<llo_original>
// kernel: tpu_custom_call.1
$region0: #{tpu_custom_call.1}
  #allocation0 [shape = 'u32[]', space=smem, size = 0x4, offset = 0x4, fixed_abs, tag = 'smem constant byte address 0x4 - core index']
  #allocation1 [shape = 'u32[144,128]{1,0:T(1,128)}', space=vmem, size = 0x12000, scoped, tag = 'internal scratch']
  %s0 = inlined_call_operand.hbm [shape: f32[2,1024], index: 0, kind: input, shape index: {}]
  %s1 = inlined_call_operand.hbm [shape: f32[8,128], index: 1, kind: output, shape index: {}]
  %s2 = sld [smem:[#allocation0]]
  $region26: #{tpu_custom_call.1} parent=0
    _
  %s4 = ssub.s32 1, %s2
  %s5 = scalar_select 0, %s4, %s2
  $region1: #{tpu_custom_call.1} parent=0
    #allocation2 [shape = 'u8[8192]{0}', space=vmem, size = 0x2000, scoped, tag = 'input window, operand 0, single buffered']
    #allocation3 [shape = 's32[1]{0}', space=sflag, size = 0x4, scoped, tag = 'scoped memory for tpu_custom_call.1']
    #allocation4 [shape = 's32[1]{0}', space=sflag, size = 0x4, scoped, tag = 'scoped memory for tpu_custom_call.1']
    #allocation5 [shape = 'u8[4096]{0}', space=vmem, size = 0x1000, scoped, tag = 'output window, operand 0, single buffered']
    %6 = vsyncpa [#allocation3], 0
    %7 = vsyncpa [#allocation4], 0
    // Predicated region
    $region2: #{tpu_custom_call.1} parent=1 // pred_check
      _
    $region3: #{tpu_custom_call.1} parent=1 // pred_check_branch
      %9 = sbr.rel (0) target = $region5
    $region4: #{tpu_custom_call.1} parent=1 // pred_region
      %s10 = sadd.s32 0, 0
      %s12 = ssub.s32 256, 256
      %13 = vsyncadd [#allocation3], %s12
      %s14 = smul.addr %s10, 8
      %s15 = smul.addr %s14, 32
      %s16 = scalar_lea.hbm %s0, %s15
      %s18 = sshll.u32 [#allocation2], 4
      %s19 = int_to_ptr.vmem [resolvable:$true] %s18
      %21 = dma.hbm_to_vmem [thread:$0]  %s16, 256, %s19, [#allocation3]
    $region5: #{tpu_custom_call.1} parent=1 // pred_fallthru
      _
    // Predicated region
    $region6: #{tpu_custom_call.1} parent=1 // pred_check
      _
    $region7: #{tpu_custom_call.1} parent=1 // pred_check_branch
      %23 = sbr.rel (0) target = $region9
    $region8: #{tpu_custom_call.1} parent=1 // pred_region
      %24 = dma.done [#allocation3], 256
    $region9: #{tpu_custom_call.1} parent=1 // pred_fallthru
      _
    %s25 = sadd.s32 0, 0
    %p26 = scmp.eq.s32.totalorder 0, 0
    // Predicated region
    $region10: #{tpu_custom_call.1} parent=1 // pred_check
      %p27 = pneg %p26
    $region11: #{tpu_custom_call.1} parent=1 // pred_check_branch
      %29 = sbr.rel (%p27) target = $region13
    $region12: #{tpu_custom_call.1} parent=1 // pred_region
      %30 = vst [vmem:[#allocation5] sm:$0xff] 0.0
    $region13: #{tpu_custom_call.1} parent=1 // pred_fallthru
      _
    %v31 = vld [vmem:[#allocation2] sm:$0xf]
    %v32 = vld [vmem:[#allocation2 + $0x4] sm:$0xf]
    %v33 = vld [vmem:[#allocation2 + $0x8] sm:$0xf]
    %v34 = vld [vmem:[#allocation2 + $0xc] sm:$0xf]
    %v35 = vsub.f32 %v32, 1e-06
    %v36 = vsub.f32 %v33, 1e-06
    %v37 = vsub.f32 %v34, 1e-06
    %v38 = vsub.f32 %v31, %v35
    %v39 = vmul.f32 %v38, %v38
    %v42 = vunpack.c.l.s4 1983009808
    %v43 = vunpack.c.0.s8 %v42
    %v44 = vlaneseq
    %v45 = vshrl.u32 %v44, 7
    %v46 = vsub.s32 %v43, %v45
    %v47 = vrot.slane %v39, %v46
    %v48 = vcombine.high %v47, %v47
    %vm51 = vcmask 1041408
    %v52 = vsel %vm51, %v47, 0.0
    %v53 = vsel %vm51, %v48, 0.0
    %v54 = vadd.f32 %v52, %v53
    %55 = vadd.xlane.f32.xlu0 %v54
    %v56 = vpop.xlane.xlu0 %55
    %v57 = vsub.f32 %v31, %v36
    %v58 = vmul.f32 %v57, %v57
    %v61 = vunpack.c.l.s4 1983009808
    %v62 = vunpack.c.0.s8 %v61
    %v63 = vlaneseq
    %v64 = vshrl.u32 %v63, 7
    %v65 = vsub.s32 %v62, %v64
    %v66 = vrot.slane %v58, %v65
    %v67 = vcombine.high %v66, %v66
    %v70 = vsel %vm51, %v66, 0.0
    %v71 = vsel %vm51, %v67, 0.0
    %v72 = vadd.f32 %v70, %v71
    %73 = vadd.xlane.f32.xlu0 %v72
    %v74 = vpop.xlane.xlu0 %73
    %v75 = vsub.f32 %v31, %v37
    %v76 = vmul.f32 %v75, %v75
    %v79 = vunpack.c.l.s4 1983009808
    %v80 = vunpack.c.0.s8 %v79
    %v81 = vlaneseq
    %v82 = vshrl.u32 %v81, 7
    %v83 = vsub.s32 %v80, %v82
    %v84 = vrot.slane %v76, %v83
    %v85 = vcombine.high %v84, %v84
    %v88 = vsel %vm51, %v84, 0.0
    %v89 = vsel %vm51, %v85, 0.0
    %v90 = vadd.f32 %v88, %v89
    %91 = vadd.xlane.f32.xlu0 %v90
    %v92 = vpop.xlane.xlu0 %91
    %v93 = vsub.f32 %v32, %v36
    %v94 = vmul.f32 %v93, %v93
    %v97 = vunpack.c.l.s4 1983009808
    %v98 = vunpack.c.0.s8 %v97
    %v99 = vlaneseq
    %v100 = vshrl.u32 %v99, 7
    %v101 = vsub.s32 %v98, %v100
    %v102 = vrot.slane %v94, %v101
    %v103 = vcombine.high %v102, %v102
    %v106 = vsel %vm51, %v102, 0.0
    %v107 = vsel %vm51, %v103, 0.0
    %v108 = vadd.f32 %v106, %v107
    %109 = vadd.xlane.f32.xlu0 %v108
    %v110 = vpop.xlane.xlu0 %109
    %v111 = vsub.f32 %v32, %v37
    %v112 = vmul.f32 %v111, %v111
    %v115 = vunpack.c.l.s4 1983009808
    %v116 = vunpack.c.0.s8 %v115
    %v117 = vlaneseq
    %v118 = vshrl.u32 %v117, 7
    %v119 = vsub.s32 %v116, %v118
    %v120 = vrot.slane %v112, %v119
    %v121 = vcombine.high %v120, %v120
    %v124 = vsel %vm51, %v120, 0.0
    %v125 = vsel %vm51, %v121, 0.0
    %v126 = vadd.f32 %v124, %v125
    %127 = vadd.xlane.f32.xlu0 %v126
    %v128 = vpop.xlane.xlu0 %127
    %v129 = vsub.f32 %v33, %v37
    %v130 = vmul.f32 %v129, %v129
    %v133 = vunpack.c.l.s4 1983009808
    %v134 = vunpack.c.0.s8 %v133
    %v135 = vlaneseq
    %v136 = vshrl.u32 %v135, 7
    %v137 = vsub.s32 %v134, %v136
    %v138 = vrot.slane %v130, %v137
    %v139 = vcombine.high %v138, %v138
    %v142 = vsel %vm51, %v138, 0.0
    %v143 = vsel %vm51, %v139, 0.0
    %v144 = vadd.f32 %v142, %v143
    %145 = vadd.xlane.f32.xlu0 %v144
    %v146 = vpop.xlane.xlu0 %145
    %vm147 = vcmask 7168
    %v148 = vsel %vm147, %v56, %v74
    %vm149 = vcmask 15360
    %v150 = vsel %vm149, %v148, %v92
    %vm151 = vcmask 23552
    %v152 = vsel %vm151, %v150, %v110
    %vm153 = vcmask 31744
    %v154 = vsel %vm153, %v152, %v128
    %vm155 = vcmask 39936
    %v156 = vsel %vm155, %v154, %v146
    %v157 = vrsqrt.pop %v156
    %v158 = vmul.f32 %v156, %v157
    %vm159 = vcmp.eq.f32.partialorder %v156, inf
    %v160 = vsel %vm159, %v156, %v158
    %vm161 = vcmp.eq.f32.partialorder %v156, 0.0
    %v162 = vand.u32 %v156, 2147483648
    %v163 = vsel %vm161, %v162, %v160
    %v164 = vmul.f32 %v163, 0.00390625
    %v165 = vsub.f32 1.0, %v164
    %v166 = vmax.f32 %v165, 0.0
    %v167 = vld [vmem:[#allocation5] sm:$0xff]
    %v168 = vmul.f32 %v166, %v166
    %vm169 = vcmask 41984
    %v170 = vsel %vm169, %v168, 0.0
    %171 = vadd.xlane.f32.xlu0 %v170
    %v172 = vpop.xlane.xlu0 %171
    %v173 = vrot.slane %v172, 4
    %v174 = vadd.f32 %v172, %v173
    %v175 = vrot.slane %v174, 2
    %v176 = vadd.f32 %v174, %v175
    %v177 = vrot.slane %v176, 1
    %v178 = vadd.f32 %v176, %v177
    %s179 = vtos %v178
    %v180 = vstv %s179
    %v181 = vadd.f32 %v167, %v180
    %182 = vst [vmem:[#allocation5] sm:$0xff] %v181
    // Predicated region
    $region14: #{tpu_custom_call.1} parent=1 // pred_check
      %p183 = pneg %p26
    $region15: #{tpu_custom_call.1} parent=1 // pred_check_branch
      %185 = sbr.rel (%p183) target = $region17
    $region16: #{tpu_custom_call.1} parent=1 // pred_region
      %v186 = vld [vmem:[#allocation5] sm:$0xff]
      %v187 = vmul.f32 %v186, 0.041666668
      %188 = vst [vmem:[#allocation5] sm:$0xff] %v187
    $region17: #{tpu_custom_call.1} parent=1 // pred_fallthru
      _
    // Predicated region
    $region18: #{tpu_custom_call.1} parent=1 // pred_check
      _
    $region19: #{tpu_custom_call.1} parent=1 // pred_check_branch
      %190 = sbr.rel (0) target = $region21
    $region20: #{tpu_custom_call.1} parent=1 // pred_region
      %s192 = ssub.s32 128, 128
      %193 = vsyncadd [#allocation4], %s192
      %s195 = sshll.u32 [#allocation5], 4
      %s196 = int_to_ptr.vmem [resolvable:$true] %s195
      %198 = dma.vmem_to_hbm [thread:$0]  %s196, 128, %s1, [#allocation4]
    $region21: #{tpu_custom_call.1} parent=1 // pred_fallthru
      _
    // Predicated region
    $region22: #{tpu_custom_call.1} parent=1 // pred_check
      _
    $region23: #{tpu_custom_call.1} parent=1 // pred_check_branch
      %200 = sbr.rel (0) target = $region25
    $region24: #{tpu_custom_call.1} parent=1 // pred_region
      %201 = dma.done [#allocation4], 128
    $region25: #{tpu_custom_call.1} parent=1 // pred_fallthru
      _
    %202 = vsyncpa [#allocation3], 1
    %203 = vsyncpa [#allocation4], 1

</llo_original>
